<compile_context>
chip_gen: v6e
topology: v6e:2x2x1
jax: 0.10.0
libtpu: 0.0.40
codegen_flags: <defaults>
</compile_context>

<pallas_src>
import math
from functools import partial

import jax
import jax.numpy as jnp
from jax import lax
from jax.experimental import pallas as pl
from jax.experimental.pallas import tpu as pltpu


def _flash_attention_kernel(q_ref, k_ref, v_ref, o_ref, m_sc, l_sc, acc_sc, *, scale):
    """One (batch, head, q-block, kv-block) grid step of causal online-softmax attention.

    q_ref: (1, 1, TQ, E), k_ref: (1, 1, TKV, E), v_ref: (1, 1, TKV, D),
    o_ref: (1, 1, TQ, D); scratch: m_sc/l_sc (TQ, 1) f32, acc_sc (TQ, D) f32.
    """
    qi = pl.program_id(2)
    ki = pl.program_id(3)
    nk = pl.num_programs(3)

    tq = q_ref.shape[2]
    tkv = k_ref.shape[2]
    q_start = qi * tq
    kv_start = ki * tkv

    @pl.when(ki == 0)
    def _init():
        m_sc[...] = jnp.full_like(m_sc, -jnp.inf)
        l_sc[...] = jnp.zeros_like(l_sc)
        acc_sc[...] = jnp.zeros_like(acc_sc)

    # Causal block classification (scalar, grid-derived):
    below_diag = kv_start <= q_start + (tq - 1)   # block contains >=1 unmasked element
    on_diag = kv_start + (tkv - 1) > q_start      # block straddles the diagonal -> needs mask

    def _step(apply_mask):
        # Fold the softmax scale into the small (TQ, E) q tile (not the (TQ, TKV) plane).
        q = q_ref[0, 0] * jnp.asarray(scale, dtype=q_ref.dtype)
        s = lax.dot_general(
            q, k_ref[0, 0],
            dimension_numbers=(((1,), (1,)), ((), ())),
            preferred_element_type=jnp.float32,
        )  # (TQ, TKV), f32 scores for this block

        if apply_mask:
            # Only diagonal-straddling blocks pay for the iota mask; off-diagonal
            # lower-triangle blocks are fully unmasked.
            row = q_start + lax.broadcasted_iota(jnp.int32, s.shape, 0)
            col = kv_start + lax.broadcasted_iota(jnp.int32, s.shape, 1)
            s = jnp.where(col > row, -jnp.inf, s)

        m_prev = m_sc[...]
        m_new = jnp.maximum(m_prev, jnp.max(s, axis=-1, keepdims=True))
        alpha = jnp.exp(m_prev - m_new)
        p = jnp.exp(s - m_new)  # unnormalized probabilities; normalization deferred

        l_sc[...] = alpha * l_sc[...] + jnp.sum(p, axis=-1, keepdims=True)
        acc_sc[...] = alpha * acc_sc[...] + lax.dot_general(
            p.astype(jnp.bfloat16), v_ref[0, 0].astype(jnp.bfloat16),
            dimension_numbers=(((1,), (0,)), ((), ())),
            preferred_element_type=jnp.float32,
        )
        m_sc[...] = m_new

    @pl.when(below_diag & on_diag)
    def _masked_step():
        _step(apply_mask=True)

    @pl.when(below_diag & jnp.logical_not(on_diag))
    def _unmasked_step():
        _step(apply_mask=False)

    @pl.when(ki == nk - 1)
    def _finalize():
        # Deferred normalization of the (TQ, D) accumulator; approx reciprocal -> EUP slot.
        o_ref[0, 0] = (
            acc_sc[...] * pl.reciprocal(l_sc[...], approx=True)
        ).astype(o_ref.dtype)


def _pick_tile(n, candidates):
    for c in candidates:
        if n % c == 0:
            return c
    return n  # short / irregular sequences: take the full extent (still layout-legal)


def full_attention(queries, keys, values, scale=None, tq=None, tkv=None):
    """queries: (B, L, H, E); keys: (B, S, H, E); values: (B, S, H, D).

    Returns V: (B, L, H, D) — same as the PyTorch module's first output
    (second output is None since output_attention=False)."""
    B, L, H, E = queries.shape
    _, S, _, D = values.shape
    scale = scale or (1.0 / math.sqrt(E))

    # glue: head-major layout for per-(b, h) tiling (see TODO about end-to-end layout)
    q = jnp.transpose(queries, (0, 2, 1, 3))  # (B, H, L, E)
    k = jnp.transpose(keys,    (0, 2, 1, 3))  # (B, H, S, E)
    v = jnp.transpose(values,  (0, 2, 1, 3))  # (B, H, S, D)

    tq = tq if tq is not None else _pick_tile(L, (256, 128))
    tkv = tkv if tkv is not None else _pick_tile(S, (512, 256, 128))
    nq, nk = L // tq, S // tkv

    kernel = partial(_flash_attention_kernel, scale=scale)

    out_bhld = pl.pallas_call(
        kernel,
        out_shape=jax.ShapeDtypeStruct((B, H, L, D), queries.dtype),
        grid_spec=pltpu.PrefetchScalarGridSpec(
            num_scalar_prefetch=0,
            grid=(B, H, nq, nk),  # KV (reduction) axis last
            in_specs=[
                pl.BlockSpec((1, 1, tq, E), lambda b, h, i, j: (b, h, i, 0)),
                # NOTE: K/V default to double-buffering; bump to pl.Buffered(3) on
                # v5e/v6e if a profile shows exposed KV DMA.
                pl.BlockSpec((1, 1, tkv, E), lambda b, h, i, j: (b, h, j, 0)),
                pl.BlockSpec((1, 1, tkv, D), lambda b, h, i, j: (b, h, j, 0)),
            ],
            # Output block index is invariant along the KV axis -> resident accumulator.
            out_specs=pl.BlockSpec((1, 1, tq, D), lambda b, h, i, j: (b, h, i, 0)),
            scratch_shapes=[
                pltpu.VMEM((tq, 1), jnp.float32),   # running max
                pltpu.VMEM((tq, 1), jnp.float32),   # running denominator
                pltpu.VMEM((tq, D), jnp.float32),   # f32 output accumulator
            ],
        ),
        compiler_params=pltpu.CompilerParams(
            dimension_semantics=("parallel", "parallel", "parallel", "arbitrary"),
            vmem_limit_bytes=64 * 1024 * 1024,
        ),
    )(q, k, v)

    return jnp.transpose(out_bhld, (0, 2, 1, 3))  # (B, L, H, D)


def _reference_full_attention(queries, keys, values, scale=None):
    """Plain-JAX reference mirroring the PyTorch forward (eval mode, causal)."""
    B, L, H, E = queries.shape
    _, S, _, D = values.shape
    scale = scale or (1.0 / math.sqrt(E))
    scores = jnp.einsum('blhe,bshe->bhls', queries, keys)
    mask = jnp.triu(jnp.ones((L, S), dtype=bool), k=1)
    scores = jnp.where(mask[None, None], -jnp.inf, scores)
    A = jax.nn.softmax(scale * scores, axis=-1)
    return jnp.einsum('bhls,bshd->blhd', A, values)


if __name__ == "__main__":
    key = jax.random.PRNGKey(0)

    # Test 1: small shapes matching the module's convention (single block per head).
    B, L, S, H, E, D = 2, 8, 8, 4, 32, 32
    kq, kk, kv = jax.random.split(key, 3)
    queries = jax.random.normal(kq, (B, L, H, E), dtype=jnp.float32)
    keys_ = jax.random.normal(kk, (B, S, H, E), dtype=jnp.float32)
    values = jax.random.normal(kv, (B, S, H, D), dtype=jnp.float32)

    out = jax.block_until_ready(full_attention(queries, keys_, values))
    ref = _reference_full_attention(queries, keys_, values)
    assert out.shape == (B, L, H, D)
    # bf16 P·V + approx reciprocal => relaxed tolerance vs. the f32 reference.
    assert jnp.allclose(out, ref, atol=2e-2, rtol=2e-2), "mismatch vs reference (small)"

    # Test 2: exercise the tiled online-softmax path (multiple q & kv blocks,
    # causal block skipping, diagonal vs. off-diagonal mask paths).
    B2, L2, S2, H2, E2, D2 = 2, 256, 256, 4, 64, 64
    kq2, kk2, kv2 = jax.random.split(jax.random.PRNGKey(1), 3)
    q2 = jax.random.normal(kq2, (B2, L2, H2, E2), dtype=jnp.float32)
    k2 = jax.random.normal(kk2, (B2, S2, H2, E2), dtype=jnp.float32)
    v2 = jax.random.normal(kv2, (B2, S2, H2, D2), dtype=jnp.float32)

    out2 = jax.block_until_ready(full_attention(q2, k2, v2, tq=128, tkv=128))
    ref2 = _reference_full_attention(q2, k2, v2)
    assert out2.shape == (B2, L2, H2, D2)
    assert jnp.allclose(out2, ref2, atol=2e-2, rtol=2e-2), "mismatch vs reference (tiled)"

    print("KERNEL_OK")
</pallas_src>

<mosaic_0001>
module attributes {stable_mosaic.version = 11 : i64} {
  func.func @_flash_attention_kernel(%arg0: i32, %arg1: i32, %arg2: i32, %arg3: i32, %arg4: memref<1x1x8x32xf32, #tpu.memory_space<vmem>>, %arg5: memref<1x1x8x32xf32, #tpu.memory_space<vmem>>, %arg6: memref<1x1x8x32xf32, #tpu.memory_space<vmem>>, %arg7: memref<1x1x8x32xf32, #tpu.memory_space<vmem>>, %arg8: memref<8x1xf32, #tpu.memory_space<vmem>>, %arg9: memref<8x1xf32, #tpu.memory_space<vmem>>, %arg10: memref<8x32xf32, #tpu.memory_space<vmem>>) attributes {dimension_semantics = [#tpu.dimension_semantics<parallel>, #tpu.dimension_semantics<parallel>, #tpu.dimension_semantics<parallel>, #tpu.dimension_semantics<arbitrary>], iteration_bounds = array<i64: 2, 4, 1, 1>, scalar_prefetch = 0 : i64, scratch_operands = 3 : i64, tpu.core_type = #tpu.core_type<tc>, window_params = [{transform_indices = @transform_0, window_bounds = array<i64: 1, 1, 8, 32>}, {transform_indices = @transform_1, window_bounds = array<i64: 1, 1, 8, 32>}, {transform_indices = @transform_2, window_bounds = array<i64: 1, 1, 8, 32>}, {transform_indices = @transform_3, window_bounds = array<i64: 1, 1, 8, 32>}]} {
    %c8_i32 = arith.constant 8 : i32
    %0 = arith.muli %arg2, %c8_i32 : i32
    %c8_i32_0 = arith.constant 8 : i32
    %1 = arith.muli %arg3, %c8_i32_0 : i32
    %c0_i32 = arith.constant 0 : i32
    %2 = arith.cmpi eq, %arg3, %c0_i32 : i32
    %3 = arith.extui %2 : i1 to i32
    %c0_i32_1 = arith.constant 0 : i32
    %4 = arith.cmpi ne, %3, %c0_i32_1 : i32
    scf.if %4 {
      %cst = arith.constant 0xFF800000 : f32
      %19 = vector.broadcast %cst : f32 to vector<8x1xf32>
      %c0 = arith.constant 0 : index
      %c0_7 = arith.constant 0 : index
      %20 = vector.load %arg8[%c0, %c0_7] : memref<8x1xf32, #tpu.memory_space<vmem>>, vector<8x1xf32>
      tpu.vector_store %arg8[%c0, %c0_7], %19 {strides = array<i32>} : memref<8x1xf32, #tpu.memory_space<vmem>>, vector<8x1xf32>,
      %cst_8 = arith.constant 0.000000e+00 : f32
      %21 = vector.broadcast %cst_8 : f32 to vector<8x1xf32>
      %c0_9 = arith.constant 0 : index
      %c0_10 = arith.constant 0 : index
      %22 = vector.load %arg9[%c0_9, %c0_10] : memref<8x1xf32, #tpu.memory_space<vmem>>, vector<8x1xf32>
      tpu.vector_store %arg9[%c0_9, %c0_10], %21 {strides = array<i32>} : memref<8x1xf32, #tpu.memory_space<vmem>>, vector<8x1xf32>,
      %cst_11 = arith.constant 0.000000e+00 : f32
      %23 = vector.broadcast %cst_11 : f32 to vector<8x32xf32>
      %c0_12 = arith.constant 0 : index
      %c0_13 = arith.constant 0 : index
      %24 = vector.load %arg10[%c0_12, %c0_13] : memref<8x32xf32, #tpu.memory_space<vmem>>, vector<8x32xf32>
      tpu.vector_store %arg10[%c0_12, %c0_13], %23 {strides = array<i32>} : memref<8x32xf32, #tpu.memory_space<vmem>>, vector<8x32xf32>,
    } else {
    }
    %c7_i32 = arith.constant 7 : i32
    %5 = arith.addi %0, %c7_i32 : i32
    %6 = arith.cmpi sle, %1, %5 : i32
    %c7_i32_2 = arith.constant 7 : i32
    %7 = arith.addi %1, %c7_i32_2 : i32
    %8 = arith.cmpi sgt, %7, %0 : i32
    %9 = arith.andi %6, %8 : i1
    %10 = arith.extui %9 : i1 to i32
    %c0_i32_3 = arith.constant 0 : i32
    %11 = arith.cmpi ne, %10, %c0_i32_3 : i32
    scf.if %11 {
      %c0 = arith.constant 0 : index
      %c0_7 = arith.constant 0 : index
      %c0_8 = arith.constant 0 : index
      %c0_9 = arith.constant 0 : index
      %19 = vector.load %arg4[%c0, %c0_7, %c0_8, %c0_9] : memref<1x1x8x32xf32, #tpu.memory_space<vmem>>, vector<1x1x8x32xf32>
      %20 = vector.shape_cast %19 : vector<1x1x8x32xf32> to vector<8x32xf32>
      %cst = arith.constant 0.176776692 : f32
      %21 = vector.broadcast %cst : f32 to vector<8x32xf32>
      %22 = arith.mulf %20, %21 : vector<8x32xf32>
      %c0_10 = arith.constant 0 : index
      %c0_11 = arith.constant 0 : index
      %c0_12 = arith.constant 0 : index
      %c0_13 = arith.constant 0 : index
      %23 = vector.load %arg5[%c0_10, %c0_11, %c0_12, %c0_13] : memref<1x1x8x32xf32, #tpu.memory_space<vmem>>, vector<1x1x8x32xf32>
      %24 = vector.shape_cast %23 : vector<1x1x8x32xf32> to vector<8x32xf32>
      %cst_14 = arith.constant dense<0.000000e+00> : vector<8x8xf32>
      %25 = tpu.matmul %22, %24, %cst_14 {dimension_numbers = #tpu.dot_dimension_numbers<[1], [1], [0], [0], [0, 0, 1, 0], [], []>} : vector<8x32xf32>, vector<8x32xf32>, vector<8x8xf32> -> vector<8x8xf32>
      %26 = tpu.iota {dimensions = array<i32: 0>} : vector<8x8xi32>
      %27 = vector.broadcast %0 : i32 to vector<8x8xi32>
      %28 = arith.addi %27, %26 : vector<8x8xi32>
      %29 = tpu.iota {dimensions = array<i32: 1>} : vector<8x8xi32>
      %30 = vector.broadcast %1 : i32 to vector<8x8xi32>
      %31 = arith.addi %30, %29 : vector<8x8xi32>
      %32 = arith.cmpi sgt, %31, %28 : vector<8x8xi32>
      %cst_15 = arith.constant 0xFF800000 : f32
      %33 = vector.broadcast %cst_15 : f32 to vector<8x8xf32>
      %34 = arith.select %32, %33, %25 : vector<8x8xi1>, vector<8x8xf32>
      %c0_16 = arith.constant 0 : index
      %c0_17 = arith.constant 0 : index
      %35 = vector.load %arg8[%c0_16, %c0_17] : memref<8x1xf32, #tpu.memory_space<vmem>>, vector<8x1xf32>
      %cst_18 = arith.constant dense<0xFF800000> : vector<8xf32>
      %36 = vector.multi_reduction <maximumf>, %34, %cst_18 [1] : vector<8x8xf32> to vector<8xf32>
      %37 = vector.shape_cast %36 : vector<8xf32> to vector<8x1xf32>
      %38 = arith.maximumf %35, %37 : vector<8x1xf32>
      %39 = arith.subf %35, %38 : vector<8x1xf32>
      %40 = math.exp %39 : vector<8x1xf32>
      %41 = vector.broadcast %38 : vector<8x1xf32> to vector<8x8xf32>
      %42 = arith.subf %34, %41 : vector<8x8xf32>
      %43 = math.exp %42 : vector<8x8xf32>
      %c0_19 = arith.constant 0 : index
      %c0_20 = arith.constant 0 : index
      %44 = vector.load %arg9[%c0_19, %c0_20] : memref<8x1xf32, #tpu.memory_space<vmem>>, vector<8x1xf32>
      %45 = arith.mulf %40, %44 : vector<8x1xf32>
      %cst_21 = arith.constant dense<0.000000e+00> : vector<8xf32>
      %46 = vector.multi_reduction <add>, %43, %cst_21 [1] : vector<8x8xf32> to vector<8xf32>
      %47 = vector.shape_cast %46 : vector<8xf32> to vector<8x1xf32>
      %48 = arith.addf %45, %47 : vector<8x1xf32>
      %c0_22 = arith.constant 0 : index
      %c0_23 = arith.constant 0 : index
      %49 = vector.load %arg9[%c0_22, %c0_23] : memref<8x1xf32, #tpu.memory_space<vmem>>, vector<8x1xf32>
      tpu.vector_store %arg9[%c0_22, %c0_23], %48 {strides = array<i32>} : memref<8x1xf32, #tpu.memory_space<vmem>>, vector<8x1xf32>,
      %c0_24 = arith.constant 0 : index
      %c0_25 = arith.constant 0 : index
      %50 = vector.load %arg10[%c0_24, %c0_25] : memref<8x32xf32, #tpu.memory_space<vmem>>, vector<8x32xf32>
      %51 = vector.broadcast %40 : vector<8x1xf32> to vector<8x32xf32>
      %52 = arith.mulf %51, %50 : vector<8x32xf32>
      %53 = arith.truncf %43 : vector<8x8xf32> to vector<8x8xbf16>
      %c0_26 = arith.constant 0 : index
      %c0_27 = arith.constant 0 : index
      %c0_28 = arith.constant 0 : index
      %c0_29 = arith.constant 0 : index
      %54 = vector.load %arg6[%c0_26, %c0_27, %c0_28, %c0_29] : memref<1x1x8x32xf32, #tpu.memory_space<vmem>>, vector<1x1x8x32xf32>
      %55 = vector.shape_cast %54 : vector<1x1x8x32xf32> to vector<8x32xf32>
      %56 = arith.truncf %55 : vector<8x32xf32> to vector<8x32xbf16>
      %cst_30 = arith.constant dense<0.000000e+00> : vector<8x32xf32>
      %57 = tpu.matmul %53, %56, %cst_30 {dimension_numbers = #tpu.dot_dimension_numbers<[1], [0], [0], [1], [0, 0, 1, 1], [], []>} : vector<8x8xbf16>, vector<8x32xbf16>, vector<8x32xf32> -> vector<8x32xf32>
      %58 = arith.addf %52, %57 : vector<8x32xf32>
      %c0_31 = arith.constant 0 : index
      %c0_32 = arith.constant 0 : index
      %59 = vector.load %arg10[%c0_31, %c0_32] : memref<8x32xf32, #tpu.memory_space<vmem>>, vector<8x32xf32>
      tpu.vector_store %arg10[%c0_31, %c0_32], %58 {strides = array<i32>} : memref<8x32xf32, #tpu.memory_space<vmem>>, vector<8x32xf32>,
      %c0_33 = arith.constant 0 : index
      %c0_34 = arith.constant 0 : index
      %60 = vector.load %arg8[%c0_33, %c0_34] : memref<8x1xf32, #tpu.memory_space<vmem>>, vector<8x1xf32>
      tpu.vector_store %arg8[%c0_33, %c0_34], %38 {strides = array<i32>} : memref<8x1xf32, #tpu.memory_space<vmem>>, vector<8x1xf32>,
    } else {
    }
    %true = arith.constant true
    %12 = arith.xori %8, %true : i1
    %13 = arith.andi %6, %12 : i1
    %14 = arith.extui %13 : i1 to i32
    %c0_i32_4 = arith.constant 0 : i32
    %15 = arith.cmpi ne, %14, %c0_i32_4 : i32
    scf.if %15 {
      %c0 = arith.constant 0 : index
      %c0_7 = arith.constant 0 : index
      %c0_8 = arith.constant 0 : index
      %c0_9 = arith.constant 0 : index
      %19 = vector.load %arg4[%c0, %c0_7, %c0_8, %c0_9] : memref<1x1x8x32xf32, #tpu.memory_space<vmem>>, vector<1x1x8x32xf32>
      %20 = vector.shape_cast %19 : vector<1x1x8x32xf32> to vector<8x32xf32>
      %cst = arith.constant 0.176776692 : f32
      %21 = vector.broadcast %cst : f32 to vector<8x32xf32>
      %22 = arith.mulf %20, %21 : vector<8x32xf32>
      %c0_10 = arith.constant 0 : index
      %c0_11 = arith.constant 0 : index
      %c0_12 = arith.constant 0 : index
      %c0_13 = arith.constant 0 : index
      %23 = vector.load %arg5[%c0_10, %c0_11, %c0_12, %c0_13] : memref<1x1x8x32xf32, #tpu.memory_space<vmem>>, vector<1x1x8x32xf32>
      %24 = vector.shape_cast %23 : vector<1x1x8x32xf32> to vector<8x32xf32>
      %cst_14 = arith.constant dense<0.000000e+00> : vector<8x8xf32>
      %25 = tpu.matmul %22, %24, %cst_14 {dimension_numbers = #tpu.dot_dimension_numbers<[1], [1], [0], [0], [0, 0, 1, 0], [], []>} : vector<8x32xf32>, vector<8x32xf32>, vector<8x8xf32> -> vector<8x8xf32>
      %c0_15 = arith.constant 0 : index
      %c0_16 = arith.constant 0 : index
      %26 = vector.load %arg8[%c0_15, %c0_16] : memref<8x1xf32, #tpu.memory_space<vmem>>, vector<8x1xf32>
      %cst_17 = arith.constant dense<0xFF800000> : vector<8xf32>
      %27 = vector.multi_reduction <maximumf>, %25, %cst_17 [1] : vector<8x8xf32> to vector<8xf32>
      %28 = vector.shape_cast %27 : vector<8xf32> to vector<8x1xf32>
      %29 = arith.maximumf %26, %28 : vector<8x1xf32>
      %30 = arith.subf %26, %29 : vector<8x1xf32>
      %31 = math.exp %30 : vector<8x1xf32>
      %32 = vector.broadcast %29 : vector<8x1xf32> to vector<8x8xf32>
      %33 = arith.subf %25, %32 : vector<8x8xf32>
      %34 = math.exp %33 : vector<8x8xf32>
      %c0_18 = arith.constant 0 : index
      %c0_19 = arith.constant 0 : index
      %35 = vector.load %arg9[%c0_18, %c0_19] : memref<8x1xf32, #tpu.memory_space<vmem>>, vector<8x1xf32>
      %36 = arith.mulf %31, %35 : vector<8x1xf32>
      %cst_20 = arith.constant dense<0.000000e+00> : vector<8xf32>
      %37 = vector.multi_reduction <add>, %34, %cst_20 [1] : vector<8x8xf32> to vector<8xf32>
      %38 = vector.shape_cast %37 : vector<8xf32> to vector<8x1xf32>
      %39 = arith.addf %36, %38 : vector<8x1xf32>
      %c0_21 = arith.constant 0 : index
      %c0_22 = arith.constant 0 : index
      %40 = vector.load %arg9[%c0_21, %c0_22] : memref<8x1xf32, #tpu.memory_space<vmem>>, vector<8x1xf32>
      tpu.vector_store %arg9[%c0_21, %c0_22], %39 {strides = array<i32>} : memref<8x1xf32, #tpu.memory_space<vmem>>, vector<8x1xf32>,
      %c0_23 = arith.constant 0 : index
      %c0_24 = arith.constant 0 : index
      %41 = vector.load %arg10[%c0_23, %c0_24] : memref<8x32xf32, #tpu.memory_space<vmem>>, vector<8x32xf32>
      %42 = vector.broadcast %31 : vector<8x1xf32> to vector<8x32xf32>
      %43 = arith.mulf %42, %41 : vector<8x32xf32>
      %44 = arith.truncf %34 : vector<8x8xf32> to vector<8x8xbf16>
      %c0_25 = arith.constant 0 : index
      %c0_26 = arith.constant 0 : index
      %c0_27 = arith.constant 0 : index
      %c0_28 = arith.constant 0 : index
      %45 = vector.load %arg6[%c0_25, %c0_26, %c0_27, %c0_28] : memref<1x1x8x32xf32, #tpu.memory_space<vmem>>, vector<1x1x8x32xf32>
      %46 = vector.shape_cast %45 : vector<1x1x8x32xf32> to vector<8x32xf32>
      %47 = arith.truncf %46 : vector<8x32xf32> to vector<8x32xbf16>
      %cst_29 = arith.constant dense<0.000000e+00> : vector<8x32xf32>
      %48 = tpu.matmul %44, %47, %cst_29 {dimension_numbers = #tpu.dot_dimension_numbers<[1], [0], [0], [1], [0, 0, 1, 1], [], []>} : vector<8x8xbf16>, vector<8x32xbf16>, vector<8x32xf32> -> vector<8x32xf32>
      %49 = arith.addf %43, %48 : vector<8x32xf32>
      %c0_30 = arith.constant 0 : index
      %c0_31 = arith.constant 0 : index
      %50 = vector.load %arg10[%c0_30, %c0_31] : memref<8x32xf32, #tpu.memory_space<vmem>>, vector<8x32xf32>
      tpu.vector_store %arg10[%c0_30, %c0_31], %49 {strides = array<i32>} : memref<8x32xf32, #tpu.memory_space<vmem>>, vector<8x32xf32>,
      %c0_32 = arith.constant 0 : index
      %c0_33 = arith.constant 0 : index
      %51 = vector.load %arg8[%c0_32, %c0_33] : memref<8x1xf32, #tpu.memory_space<vmem>>, vector<8x1xf32>
      tpu.vector_store %arg8[%c0_32, %c0_33], %29 {strides = array<i32>} : memref<8x1xf32, #tpu.memory_space<vmem>>, vector<8x1xf32>,
    } else {
    }
    %c0_i32_5 = arith.constant 0 : i32
    %16 = arith.cmpi eq, %arg3, %c0_i32_5 : i32
    %17 = arith.extui %16 : i1 to i32
    %c0_i32_6 = arith.constant 0 : i32
    %18 = arith.cmpi ne, %17, %c0_i32_6 : i32
    scf.if %18 {
      %c0 = arith.constant 0 : index
      %c0_7 = arith.constant 0 : index
      %19 = vector.load %arg10[%c0, %c0_7] : memref<8x32xf32, #tpu.memory_space<vmem>>, vector<8x32xf32>
      %c0_8 = arith.constant 0 : index
      %c0_9 = arith.constant 0 : index
      %20 = vector.load %arg9[%c0_8, %c0_9] : memref<8x1xf32, #tpu.memory_space<vmem>>, vector<8x1xf32>
      %21 = tpu.reciprocal %20 {approx = true} : vector<8x1xf32> -> vector<8x1xf32>
      %22 = vector.broadcast %21 : vector<8x1xf32> to vector<8x32xf32>
      %23 = arith.mulf %19, %22 : vector<8x32xf32>
      %c0_10 = arith.constant 0 : index
      %c0_11 = arith.constant 0 : index
      %c0_12 = arith.constant 0 : index
      %c0_13 = arith.constant 0 : index
      %24 = vector.load %arg7[%c0_10, %c0_11, %c0_12, %c0_13] : memref<1x1x8x32xf32, #tpu.memory_space<vmem>>, vector<1x1x8x32xf32>
      %25 = vector.shape_cast %24 : vector<1x1x8x32xf32> to vector<8x32xf32>
      %26 = vector.shape_cast %23 : vector<8x32xf32> to vector<1x1x8x32xf32>
      tpu.vector_store %arg7[%c0_10, %c0_11, %c0_12, %c0_13], %26 {strides = array<i32>} : memref<1x1x8x32xf32, #tpu.memory_space<vmem>>, vector<1x1x8x32xf32>,
    } else {
    }
    return
  }
  func.func @transform_0(%arg0: i32, %arg1: i32, %arg2: i32, %arg3: i32) -> (i32, i32, i32, i32) {
    %c0_i32 = arith.constant 0 : i32
    %c0_i32_0 = arith.constant 0 : i32
    return %arg0, %arg1, %arg2, %c0_i32 : i32, i32, i32, i32
  }
  func.func @transform_1(%arg0: i32, %arg1: i32, %arg2: i32, %arg3: i32) -> (i32, i32, i32, i32) {
    %c0_i32 = arith.constant 0 : i32
    %c0_i32_0 = arith.constant 0 : i32
    return %arg0, %arg1, %arg3, %c0_i32 : i32, i32, i32, i32
  }
  func.func @transform_2(%arg0: i32, %arg1: i32, %arg2: i32, %arg3: i32) -> (i32, i32, i32, i32) {
    %c0_i32 = arith.constant 0 : i32
    %c0_i32_0 = arith.constant 0 : i32
    return %arg0, %arg1, %arg3, %c0_i32 : i32, i32, i32, i32
  }
  func.func @transform_3(%arg0: i32, %arg1: i32, %arg2: i32, %arg3: i32) -> (i32, i32, i32, i32) {
    %c0_i32 = arith.constant 0 : i32
    %c0_i32_0 = arith.constant 0 : i32
    return %arg0, %arg1, %arg2, %c0_i32 : i32, i32, i32, i32
  }
}

</mosaic_0001>

<llo_original>
// kernel: tpu_custom_call.1
$region0: #{tpu_custom_call.1}
  #allocation0 [shape = 'u32[]', space=smem, size = 0x4, offset = 0x4, fixed_abs, tag = 'smem constant byte address 0x4 - core index']
  #allocation1 [shape = 'u32[144,128]{1,0:T(1,128)}', space=vmem, size = 0x12000, scoped, tag = 'internal scratch']
  #allocation2 [shape = 'f32[8,1]{1,0:T(8,128)}', space=vmem, size = 0x1000, scoped, tag = 'scratch operand']
  #allocation3 [shape = 'f32[8,1]{1,0:T(8,128)}', space=vmem, size = 0x1000, scoped, tag = 'scratch operand']
  #allocation4 [shape = 'f32[8,32]{1,0:T(8,128)}', space=vmem, size = 0x1000, scoped, tag = 'scratch operand']
  %s0 = inlined_call_operand.hbm [shape: f32[2,4,8,32], index: 0, kind: input, shape index: {}]
  %s1 = inlined_call_operand.hbm [shape: f32[2,4,8,32], index: 1, kind: input, shape index: {}]
  %s2 = inlined_call_operand.hbm [shape: f32[2,4,8,32], index: 2, kind: input, shape index: {}]
  %s3 = inlined_call_operand.hbm [shape: f32[2,4,8,32], index: 3, kind: output, shape index: {}]
  %s4 = sld [smem:[#allocation0]]
  $region73: #{tpu_custom_call.1} parent=0
    _
  %s6 = ssub.s32 1, %s4
  %s7 = scalar_select 0, %s6, %s4
  $region1: #{tpu_custom_call.1} parent=0
    #allocation5 [shape = 'u8[8192]{0}', space=vmem, size = 0x2000, scoped, tag = 'input window, operand 0']
    #allocation6 [shape = 's32[2]{0}', space=sflag, size = 0x8, scoped, tag = 'scoped memory for tpu_custom_call.1']
    #allocation7 [shape = 's32[2]{0}', space=sflag, size = 0x8, scoped, tag = 'scoped memory for tpu_custom_call.1']
    #allocation8 [shape = 'u8[8192]{0}', space=vmem, size = 0x2000, scoped, tag = 'input window, operand 1']
    #allocation9 [shape = 's32[2]{0}', space=sflag, size = 0x8, scoped, tag = 'scoped memory for tpu_custom_call.1']
    #allocation10 [shape = 'u8[8192]{0}', space=vmem, size = 0x2000, scoped, tag = 'input window, operand 2']
    #allocation11 [shape = 'u8[8192]{0}', space=vmem, size = 0x2000, scoped, tag = 'output window, operand 0']
    %8 = vsyncpa [#allocation6], 0
    %s9 = scalar_lea.sflag [#allocation6], 1
    %10 = vsyncpa %s9, 0
    %11 = vsyncpa [#allocation9], 0
    %s12 = scalar_lea.sflag [#allocation9], 1
    %13 = vsyncpa %s12, 0
    %14 = vsyncpa [#allocation7], 0
    %s15 = scalar_lea.sflag [#allocation7], 1
    %16 = vsyncpa %s15, 0
    loop: start=0, step=1, limit=10
    $region2: #{tpu_custom_call.1} parent=1 // loop_pre_header
      _
    $region3: #{tpu_custom_call.1} parent=1 // loop_header
      %s18 = sphi 0, %s22
      %p19 = scmp.ge.s32.totalorder %s18, 10
      %s25 = sphi 0, %s51
      %s26 = sphi 0, %s47
      %s27 = sphi 0, %s43
      %s28 = sphi 0, %s39
      %s29 = sphi 0, %s25
      %s30 = sphi 0, %s26
      %s31 = sphi 0, %s27
      %s32 = sphi 0, %s28
      %s33 = sphi 0, %s29
      %s34 = sphi 0, %s30
      %s35 = sphi 0, %s31
      %s36 = sphi 0, %s32
      %s58 = sphi 0, %s60
      %s61 = sphi 0, %s58
      %s62 = sphi 0, %s61
      %s78 = sphi 0, %s62
      %s88 = sphi 0, %s90
      %s91 = sphi 0, %s88
      %s92 = sphi 0, %s91
      %s108 = sphi 0, %s92
      %s118 = sphi 0, %s120
      %s121 = sphi 0, %s118
      %s122 = sphi 0, %s121
      %s138 = sphi 0, %s122
      %s148 = sphi 0, %s150
      %s151 = sphi 0, %s148
      %s152 = sphi 0, %s151
      %s168 = sphi 0, %s152
    $region4: #{tpu_custom_call.1} parent=1 // loop_header_branch
      %21 = sbr.rel (%p19) target = $region8
    $region5: #{tpu_custom_call.1} parent=1 // loop_body
      %s23 = ssub.s32 %s18, 1
      %s24 = ssub.s32 %s18, 2
      %s37 = sadd.s32 1, %s28
      %p38 = scmp.ge.s32.totalorder %s37, 1
      %s39 = scalar_select %p38, 0, %s37
      %s40 = sadd.s32 1, %s27
      %s41 = scalar_select %p38, %s40, %s27
      %p42 = scmp.ge.s32.totalorder %s41, 1
      %s43 = scalar_select %p42, 0, %s41
      %s44 = sadd.s32 1, %s26
      %s45 = scalar_select %p42, %s44, %s26
      %p46 = scmp.ge.s32.totalorder %s45, 4
      %s47 = scalar_select %p46, 0, %s45
      %s48 = sadd.s32 1, %s25
      %s49 = scalar_select %p46, %s48, %s25
      %p50 = scmp.ge.s32.totalorder %s49, 2
      %s51 = scalar_select %p50, 0, %s49
      %s52 = ssub.s32 %s25, %s51
      %s53 = ssub.s32 %s26, %s47
      %s54 = sor.u32 %s52, %s53
      %s55 = ssub.s32 %s27, %s43
      %s56 = sor.u32 %s54, %s55
      %p57 = scmp.eq.s32.totalorder %s56, 0
      %s59 = sadd.s32 %s58, 1
      %s60 = scalar_select %p57, %s58, %s59
      %p63 = pneg %p57
      %p64 = scmp.eq.s32.totalorder %s18, 7
      %p65 = por %p63, %p64
      %p66 = scmp.ne.s32.totalorder %s58, %s61
      %p67 = scmp.eq.s32.totalorder %s18, 0
      %p68 = por %p66, %p67
      %p69 = scmp.ne.s32.totalorder %s58, %s61
      %p70 = scmp.eq.s32.totalorder %s23, 7
      %p71 = por %p69, %p70
      %p72 = scmp.ne.s32.totalorder %s61, %s62
      %p73 = scmp.eq.s32.totalorder %s23, 0
      %p74 = por %p72, %p73
      %p75 = scmp.ne.s32.totalorder %s61, %s62
      %p76 = scmp.eq.s32.totalorder %s24, 7
      %p77 = por %p75, %p76
      %p79 = scmp.ne.s32.totalorder %s62, %s78
      %p80 = scmp.eq.s32.totalorder %s24, 0
      %p81 = por %p79, %p80
      %s82 = ssub.s32 %s25, %s51
      %s83 = ssub.s32 %s26, %s47
      %s84 = sor.u32 %s82, %s83
      %s85 = ssub.s32 %s28, %s39
      %s86 = sor.u32 %s84, %s85
      %p87 = scmp.eq.s32.totalorder %s86, 0
      %s89 = sadd.s32 %s88, 1
      %s90 = scalar_select %p87, %s88, %s89
      %p93 = pneg %p87
      %p94 = scmp.eq.s32.totalorder %s18, 7
      %p95 = por %p93, %p94
      %p96 = scmp.ne.s32.totalorder %s88, %s91
      %p97 = scmp.eq.s32.totalorder %s18, 0
      %p98 = por %p96, %p97
      %p99 = scmp.ne.s32.totalorder %s88, %s91
      %p100 = scmp.eq.s32.totalorder %s23, 7
      %p101 = por %p99, %p100
      %p102 = scmp.ne.s32.totalorder %s91, %s92
      %p103 = scmp.eq.s32.totalorder %s23, 0
      %p104 = por %p102, %p103
      %p105 = scmp.ne.s32.totalorder %s91, %s92
      %p106 = scmp.eq.s32.totalorder %s24, 7
      %p107 = por %p105, %p106
      %p109 = scmp.ne.s32.totalorder %s92, %s108
      %p110 = scmp.eq.s32.totalorder %s24, 0
      %p111 = por %p109, %p110
      %s112 = ssub.s32 %s25, %s51
      %s113 = ssub.s32 %s26, %s47
      %s114 = sor.u32 %s112, %s113
      %s115 = ssub.s32 %s28, %s39
      %s116 = sor.u32 %s114, %s115
      %p117 = scmp.eq.s32.totalorder %s116, 0
      %s119 = sadd.s32 %s118, 1
      %s120 = scalar_select %p117, %s118, %s119
      %p123 = pneg %p117
      %p124 = scmp.eq.s32.totalorder %s18, 7
      %p125 = por %p123, %p124
      %p126 = scmp.ne.s32.totalorder %s118, %s121
      %p127 = scmp.eq.s32.totalorder %s18, 0
      %p128 = por %p126, %p127
      %p129 = scmp.ne.s32.totalorder %s118, %s121
      %p130 = scmp.eq.s32.totalorder %s23, 7
      %p131 = por %p129, %p130
      %p132 = scmp.ne.s32.totalorder %s121, %s122
      %p133 = scmp.eq.s32.totalorder %s23, 0
      %p134 = por %p132, %p133
      %p135 = scmp.ne.s32.totalorder %s121, %s122
      %p136 = scmp.eq.s32.totalorder %s24, 7
      %p137 = por %p135, %p136
      %p139 = scmp.ne.s32.totalorder %s122, %s138
      %p140 = scmp.eq.s32.totalorder %s24, 0
      %p141 = por %p139, %p140
      %s142 = ssub.s32 %s25, %s51
      %s143 = ssub.s32 %s26, %s47
      %s144 = sor.u32 %s142, %s143
      %s145 = ssub.s32 %s27, %s43
      %s146 = sor.u32 %s144, %s145
      %p147 = scmp.eq.s32.totalorder %s146, 0
      %s149 = sadd.s32 %s148, 1
      %s150 = scalar_select %p147, %s148, %s149
      %p153 = pneg %p147
      %p154 = scmp.eq.s32.totalorder %s18, 7
      %p155 = por %p153, %p154
      %p156 = scmp.ne.s32.totalorder %s148, %s151
      %p157 = scmp.eq.s32.totalorder %s18, 0
      %p158 = por %p156, %p157
      %p159 = scmp.ne.s32.totalorder %s148, %s151
      %p160 = scmp.eq.s32.totalorder %s23, 7
      %p161 = por %p159, %p160
      %p162 = scmp.ne.s32.totalorder %s151, %s152
      %p163 = scmp.eq.s32.totalorder %s23, 0
      %p164 = por %p162, %p163
      %p165 = scmp.ne.s32.totalorder %s151, %s152
      %p166 = scmp.eq.s32.totalorder %s24, 7
      %p167 = por %p165, %p166
      %p169 = scmp.ne.s32.totalorder %s152, %s168
      %p170 = scmp.eq.s32.totalorder %s24, 0
      %p171 = por %p169, %p170
      %p172 = scmp.le.s32.totalorder 1, %s18
      %p173 = scmp.lt.s32.totalorder %s18, 9
      %p174 = pnand %p172, %p173
      %p175 = pneg %p174
      // Predicated region
      $region9: #{tpu_custom_call.1} parent=5 // pred_check
        _
      $region10: #{tpu_custom_call.1} parent=5 // pred_check_branch
        %177 = sbr.rel (%p174) target = $region12
      $region11: #{tpu_custom_call.1} parent=5 // pred_region
        %s178 = ssub.s32 %s18, 1
      $region12: #{tpu_custom_call.1} parent=5 // pred_fallthru
        _
      %p179 = scmp.lt.s32.totalorder %s18, 8
      // Predicated region
      $region13: #{tpu_custom_call.1} parent=5 // pred_check
        %p180 = pneg %p179
      $region14: #{tpu_custom_call.1} parent=5 // pred_check_branch
        %182 = sbr.rel (%p180) target = $region16
      $region15: #{tpu_custom_call.1} parent=5 // pred_region
        // Predicated region
        $region17: #{tpu_custom_call.1} parent=15 // pred_check
          %p183 = pneg %p68
        $region18: #{tpu_custom_call.1} parent=15 // pred_check_branch
          %185 = sbr.rel (%p183) target = $region20
        $region19: #{tpu_custom_call.1} parent=15 // pred_region
          %s186 = sand.u32 %s58, 1
          %s187 = scalar_lea.sflag [#allocation6], %s186
          %s188 = sand.u32 %s58, 1
          %s189 = smul.addr %s188, 8
          %s190 = scalar_lea.vmem [#allocation5], %s189
          %s192 = ssub.s32 128, 128
          %193 = vsyncadd %s187, %s192
          %s194 = sadd.s32 %s27, %s26
          %s195 = smul.addr %s25, 4
          %s196 = sadd.s32 %s194, %s195
          %s197 = smul.addr %s196, 128
          %s198 = scalar_lea.hbm %s0, %s197
          %s200 = sshll.u32 %s190, 4
          %s201 = int_to_ptr.vmem [resolvable:$true] %s200
          %203 = dma.hbm_to_vmem [thread:$0]  %s198, 128, %s201, %s187
        $region20: #{tpu_custom_call.1} parent=15 // pred_fallthru
          _
        // Predicated region
        $region21: #{tpu_custom_call.1} parent=15 // pred_check
          %p204 = pneg %p98
        $region22: #{tpu_custom_call.1} parent=15 // pred_check_branch
          %206 = sbr.rel (%p204) target = $region24
        $region23: #{tpu_custom_call.1} parent=15 // pred_region
          %s207 = sand.u32 %s18, 1
          %s208 = scalar_lea.sflag [#allocation9], %s207
          %s209 = sand.u32 %s88, 1
          %s210 = smul.addr %s209, 8
          %s211 = scalar_lea.vmem [#allocation8], %s210
          %s213 = ssub.s32 128, 128
          %214 = vsyncadd %s208, %s213
          %s215 = sadd.s32 %s28, %s26
          %s216 = smul.addr %s25, 4
          %s217 = sadd.s32 %s215, %s216
          %s218 = smul.addr %s217, 128
          %s219 = scalar_lea.hbm %s1, %s218
          %s221 = sshll.u32 %s211, 4
          %s222 = int_to_ptr.vmem [resolvable:$true] %s221
          %224 = dma.hbm_to_vmem [thread:$0]  %s219, 128, %s222, %s208
        $region24: #{tpu_custom_call.1} parent=15 // pred_fallthru
          _
        // Predicated region
        $region25: #{tpu_custom_call.1} parent=15 // pred_check
          %p225 = pneg %p128
        $region26: #{tpu_custom_call.1} parent=15 // pred_check_branch
          %227 = sbr.rel (%p225) target = $region28
        $region27: #{tpu_custom_call.1} parent=15 // pred_region
          %s228 = sand.u32 %s18, 1
          %s229 = scalar_lea.sflag [#allocation9], %s228
          %s230 = sand.u32 %s118, 1
          %s231 = smul.addr %s230, 8
          %s232 = scalar_lea.vmem [#allocation10], %s231
          %s234 = ssub.s32 128, 128
          %235 = vsyncadd %s229, %s234
          %s236 = sadd.s32 %s28, %s26
          %s237 = smul.addr %s25, 4
          %s238 = sadd.s32 %s236, %s237
          %s239 = smul.addr %s238, 128
          %s240 = scalar_lea.hbm %s2, %s239
          %s242 = sshll.u32 %s232, 4
          %s243 = int_to_ptr.vmem [resolvable:$true] %s242
          %245 = dma.hbm_to_vmem [thread:$0]  %s240, 128, %s243, %s229
        $region28: #{tpu_custom_call.1} parent=15 // pred_fallthru
          _
      $region16: #{tpu_custom_call.1} parent=5 // pred_fallthru
        _
      %p246 = scmp.le.s32.totalorder 1, %s18
      %p247 = scmp.lt.s32.totalorder %s18, 9
      %p248 = pnand %p246, %p247
      %p249 = pneg %p248
      // Predicated region
      $region29: #{tpu_custom_call.1} parent=5 // pred_check
        _
      $region30: #{tpu_custom_call.1} parent=5 // pred_check_branch
        %251 = sbr.rel (%p248) target = $region32
      $region31: #{tpu_custom_call.1} parent=5 // pred_region
        %s252 = ssub.s32 %s18, 1
        %s253 = sand.u32 %s61, 1
        %s254 = scalar_lea.sflag [#allocation6], %s253
        %s255 = sand.u32 %s61, 1
        %s256 = smul.addr %s255, 8
        %s257 = scalar_lea.vmem [#allocation5], %s256
        // Predicated region
        $region33: #{tpu_custom_call.1} parent=31 // pred_check
          %p258 = pneg %p74
        $region34: #{tpu_custom_call.1} parent=31 // pred_check_branch
          %260 = sbr.rel (%p258) target = $region36
        $region35: #{tpu_custom_call.1} parent=31 // pred_region
          %261 = dma.done %s254, 128
        $region36: #{tpu_custom_call.1} parent=31 // pred_fallthru
          _
        %s262 = sand.u32 %s23, 1
        %s263 = scalar_lea.sflag [#allocation9], %s262
        %s264 = sand.u32 %s91, 1
        %s265 = smul.addr %s264, 8
        %s266 = scalar_lea.vmem [#allocation8], %s265
        // Predicated region
        $region37: #{tpu_custom_call.1} parent=31 // pred_check
          %p267 = pneg %p104
        $region38: #{tpu_custom_call.1} parent=31 // pred_check_branch
          %269 = sbr.rel (%p267) target = $region40
        $region39: #{tpu_custom_call.1} parent=31 // pred_region
          %270 = dma.done %s263, 128
        $region40: #{tpu_custom_call.1} parent=31 // pred_fallthru
          _
        %s271 = sand.u32 %s23, 1
        %s272 = scalar_lea.sflag [#allocation9], %s271
        %s273 = sand.u32 %s121, 1
        %s274 = smul.addr %s273, 8
        %s275 = scalar_lea.vmem [#allocation10], %s274
        // Predicated region
        $region41: #{tpu_custom_call.1} parent=31 // pred_check
          %p276 = pneg %p134
        $region42: #{tpu_custom_call.1} parent=31 // pred_check_branch
          %278 = sbr.rel (%p276) target = $region44
        $region43: #{tpu_custom_call.1} parent=31 // pred_region
          %279 = dma.done %s272, 128
        $region44: #{tpu_custom_call.1} parent=31 // pred_fallthru
          _
        %s280 = sand.u32 %s61, 1
        %s281 = scalar_lea.sflag [#allocation6], %s280
        %s282 = sand.u32 %s61, 1
        %s283 = smul.addr %s282, 8
        %s284 = scalar_lea.vmem [#allocation5], %s283
        %p285 = pneg %p74
        %p286 = pneg %p71
        %s287 = sand.u32 %s23, 1
        %s288 = scalar_lea.sflag [#allocation9], %s287
        %s289 = sand.u32 %s91, 1
        %s290 = smul.addr %s289, 8
        %s291 = scalar_lea.vmem [#allocation8], %s290
        %p292 = pneg %p104
        %p293 = pneg %p101
        %s294 = sand.u32 %s23, 1
        %s295 = scalar_lea.sflag [#allocation9], %s294
        %s296 = sand.u32 %s121, 1
        %s297 = smul.addr %s296, 8
        %s298 = scalar_lea.vmem [#allocation10], %s297
        %p299 = pneg %p134
        %p300 = pneg %p131
        %p301 = pneg %p164
        %p302 = pneg %p161
        %s303 = sand.u32 %s151, 1
        %s304 = scalar_lea.sflag [#allocation7], %s303
        %s305 = sand.u32 %s151, 1
        %s306 = smul.addr %s305, 8
        %s307 = scalar_lea.vmem [#allocation11], %s306
        %s309 = smul.u32 %s31, 8
        %s310 = smul.u32 %s32, 8
        %p311 = scmp.eq.s32.totalorder %s32, 0
        // Predicated region
        $region45: #{tpu_custom_call.1} parent=31 // pred_check
          %p312 = pneg %p311
        $region46: #{tpu_custom_call.1} parent=31 // pred_check_branch
          %314 = sbr.rel (%p312) target = $region48
        $region47: #{tpu_custom_call.1} parent=31 // pred_region
          %vm315 = vcmask 7168
          %316 = vst.msk [vmem:[#allocation2] sm:$0xff] %vm315, -inf
          %317 = vst.msk [vmem:[#allocation3] sm:$0xff] %vm315, 0.0
          %vm318 = vcmask 261120
          %319 = vst.msk [vmem:[#allocation4] sm:$0xff] %vm318, 0.0
        $region48: #{tpu_custom_call.1} parent=31 // pred_fallthru
          _
        %s320 = sadd.s32 %s309, 7
        %p321 = scmp.le.s32.totalorder %s310, %s320
        %s322 = sadd.s32 %s310, 7
        %p323 = scmp.gt.s32.totalorder %s322, %s309
        %p324 = pnand %p321, %p323
        %p325 = pneg %p324
        // Predicated region
        $region49: #{tpu_custom_call.1} parent=31 // pred_check
          _
        $region50: #{tpu_custom_call.1} parent=31 // pred_check_branch
          %327 = sbr.rel (%p324) target = $region52
        $region51: #{tpu_custom_call.1} parent=31 // pred_region
          %v328 = vld [vmem:[%s257] sm:$0xff]
          %v329 = vmul.f32 %v328, 0.17677669
          %v330 = vld [vmem:[%s266] sm:$0xff]
          %vm331 = vcmask 261120
          %v333 = vsel %vm331, %v329, 0
          %v336 = vsel %vm331, %v330, 0
          %338 = vmatprep.subr.mxu0 0.0
          %339 = vmatpush1.xpose.msra.mxu0 0.0
          %340 = vmatprep.subr.mxu0 0.0
          %341 = vmatpush1.xpose.msra.mxu0 0.0
          %342 = vmatprep.subr.mxu0 0.0
          %343 = vmatpush1.xpose.msra.mxu0 0.0
          %344 = vmatprep.subr.mxu0 0.0
          %345 = vmatpush1.xpose.msra.mxu0 0.0
          %346 = vmatprep.subr.mxu0 0.0
          %347 = vmatpush1.xpose.msra.mxu0 0.0
          %348 = vmatprep.subr.mxu0 0.0
          %349 = vmatpush1.xpose.msra.mxu0 0.0
          %350 = vmatprep.subr.mxu0 0.0
          %351 = vmatpush1.xpose.msra.mxu0 0.0
          %352 = vmatprep.subr.mxu0 0.0
          %353 = vmatpush1.xpose.msra.mxu0 0.0
          %354 = vmatprep.subr.mxu0 0.0
          %355 = vmatpush1.xpose.msra.mxu0 0.0
          %356 = vmatprep.subr.mxu0 0.0
          %357 = vmatpush1.xpose.msra.mxu0 0.0
          %358 = vmatprep.subr.mxu0 0.0
          %359 = vmatpush1.xpose.msra.mxu0 0.0
          %360 = vmatprep.subr.mxu0 0.0
          %361 = vmatpush1.xpose.msra.mxu0 0.0
          %362 = vmatprep.subr.mxu0 0.0
          %363 = vmatpush1.xpose.msra.mxu0 0.0
          %364 = vmatprep.subr.mxu0 0.0
          %365 = vmatpush1.xpose.msra.mxu0 0.0
          %366 = vmatprep.subr.mxu0 0.0
          %367 = vmatpush1.xpose.msra.mxu0 0.0
          %368 = vmatprep.subr.mxu0 0.0
          %369 = vmatpush1.xpose.msra.mxu0 %v336
          %370 = vmatprep.subr.mxu0 0.0
          %371 = vmatpush2.xpose.msra.mxu0 0.0
          %372 = vmatprep.subr.mxu0 0.0
          %373 = vmatpush2.xpose.msra.mxu0 0.0
          %374 = vmatprep.subr.mxu0 0.0
          %375 = vmatpush2.xpose.msra.mxu0 0.0
          %376 = vmatprep.subr.mxu0 0.0
          %377 = vmatpush2.xpose.msra.mxu0 0.0
          %378 = vmatprep.subr.mxu0 0.0
          %379 = vmatpush2.xpose.msra.mxu0 0.0
          %380 = vmatprep.subr.mxu0 0.0
          %381 = vmatpush2.xpose.msra.mxu0 0.0
          %382 = vmatprep.subr.mxu0 0.0
          %383 = vmatpush2.xpose.msra.mxu0 0.0
          %384 = vmatprep.subr.mxu0 0.0
          %385 = vmatpush2.xpose.msra.mxu0 0.0
          %386 = vmatprep.subr.mxu0 0.0
          %387 = vmatpush2.xpose.msra.mxu0 0.0
          %388 = vmatprep.subr.mxu0 0.0
          %389 = vmatpush2.xpose.msra.mxu0 0.0
          %390 = vmatprep.subr.mxu0 0.0
          %391 = vmatpush2.xpose.msra.mxu0 0.0
          %392 = vmatprep.subr.mxu0 0.0
          %393 = vmatpush2.xpose.msra.mxu0 0.0
          %394 = vmatprep.subr.mxu0 0.0
          %395 = vmatpush2.xpose.msra.mxu0 0.0
          %396 = vmatprep.subr.mxu0 0.0
          %397 = vmatpush2.xpose.msra.mxu0 0.0
          %398 = vmatprep.subr.mxu0 0.0
          %399 = vmatpush2.xpose.msra.mxu0 0.0
          %400 = vmatprep.subr.mxu0 0.0
          %401 = vmatpush2.xpose.msra.mxu0 0.0
          %402 = vmatprep.mubr.f32.mxu0 0.0
          %403 = vmatmul.mubr.f32.gmra.mxu0 %v333
          %v404 = vpop.f32.mrf.mxu0
          %v405 = vadd.f32 0.0, %v404
          %v406 = vpop.f32.mrf.mxu0
          %407 = vdwg.mxu0
          %v408 = vlaneseq
          %v409 = vshrl.u32 %v408, 7
          %v410 = vstv %s309
          %v411 = vadd.s32 %v410, %v409
          %v412 = vlaneseq
          %v413 = vand.u32 %v412, 127
          %v414 = vstv %s310
          %v415 = vadd.s32 %v414, %v413
          %vm416 = vcmp.gt.s32.totalorder %v415, %v411
          %v417 = vsel %vm416, -inf, %v405
          %v418 = vld [vmem:[#allocation2] sm:$0xff]
          %vm419 = vcmask 64512
          %v420 = vsel %vm419, %v417, -inf
          %421 = vmax.xlane.f32.xlu0 %v420
          %v422 = vpop.xlane.xlu0 %421
          %v423 = vmax.f32 %v418, %v422
          %v424 = vsub.f32 %v418, %v423
          %v425 = vmul.f32 %v424, 1.442695
          %v426 = vpow.pop %v425
          %428 = vset.pattern.permute.xlu0 0
          %429 = vperm.xlu0 %428, %v423
          %v430 = vpop.permute.xlu0 %429
          %v432 = vsub.f32 %v417, %v430
          %v433 = vmul.f32 %v432, 1.442695
          %v434 = vpow.pop %v433
          %v435 = vld [vmem:[#allocation3] sm:$0xff]
          %v436 = vmul.f32 %v426, %v435
          %v437 = vsel %vm419, %v434, 0.0
          %438 = vadd.xlane.f32.xlu0 %v437
          %v439 = vpop.xlane.xlu0 %438
          %v440 = vadd.f32 %v436, %v439
          %vm441 = vcmask 7168
          %442 = vst.msk [vmem:[#allocation3] sm:$0xff] %vm441, %v440
          %v443 = vld [vmem:[#allocation4] sm:$0xff]
          %445 = vset.pattern.permute.xlu0 0
          %446 = vperm.xlu0 %445, %v426
          %v447 = vpop.permute.xlu0 %446
          %v449 = vmul.f32 %v447, %v443
          %v450 = vpack.c.bf16 %v434, %v434
          %v451 = vld [vmem:[%s275] sm:$0xff]
          %v452 = vpack.c.bf16 %v451, %v451
          %v454 = vsel %vm419, %v450, 0
          %vm456 = vcmask 1043456
          %v458 = vsel %vm456, %v452, 0
          %460 = vmatprep.subr.bf16.mxu0 0
          %461 = vmatpush1.bf16.msra.mxu0 0
          %462 = vmatprep.subr.bf16.mxu0 0
          %463 = vmatpush1.bf16.msra.mxu0 0
          %464 = vmatprep.subr.bf16.mxu0 0
          %465 = vmatpush1.bf16.msra.mxu0 0
          %466 = vmatprep.subr.bf16.mxu0 0
          %467 = vmatpush1.bf16.msra.mxu0 0
          %468 = vmatprep.subr.bf16.mxu0 0
          %469 = vmatpush1.bf16.msra.mxu0 0
          %470 = vmatprep.subr.bf16.mxu0 0
          %471 = vmatpush1.bf16.msra.mxu0 0
          %472 = vmatprep.subr.bf16.mxu0 0
          %473 = vmatpush1.bf16.msra.mxu0 0
          %474 = vmatprep.subr.bf16.mxu0 0
          %475 = vmatpush1.bf16.msra.mxu0 %v458
          %476 = vmatprep.subr.bf16.mxu0 0
          %477 = vmatpush2.bf16.msra.mxu0 0
          %478 = vmatprep.subr.bf16.mxu0 0
          %479 = vmatpush2.bf16.msra.mxu0 0
          %480 = vmatprep.subr.bf16.mxu0 0
          %481 = vmatpush2.bf16.msra.mxu0 0
          %482 = vmatprep.subr.bf16.mxu0 0
          %483 = vmatpush2.bf16.msra.mxu0 0
          %484 = vmatprep.subr.bf16.mxu0 0
          %485 = vmatpush2.bf16.msra.mxu0 0
          %486 = vmatprep.subr.bf16.mxu0 0
          %487 = vmatpush2.bf16.msra.mxu0 0
          %488 = vmatprep.subr.bf16.mxu0 0
          %489 = vmatpush2.bf16.msra.mxu0 0
          %490 = vmatprep.subr.bf16.mxu0 0
          %491 = vmatpush2.bf16.msra.mxu0 0
          %492 = vmatprep.mubr.bf16.mxu0 0
          %493 = vmatmul.mubr.bf16.gmra.mxu0 %v454
          %v494 = vpop.f32.mrf.mxu0
          %v495 = vadd.f32 0.0, %v494
          %v496 = vpop.f32.mrf.mxu0
          %v497 = vpop.f32.mrf.mxu0
          %v498 = vpop.f32.mrf.mxu0
          %499 = vdwg.mxu0
          %v500 = vadd.f32 %v449, %v495
          %501 = vst.msk [vmem:[#allocation4] sm:$0xff] %vm331, %v500
          %502 = vst.msk [vmem:[#allocation2] sm:$0xff] %vm441, %v423
        $region52: #{tpu_custom_call.1} parent=31 // pred_fallthru
          _
        %p503 = scmp.le.s32.totalorder %s322, %s309
        %p504 = pnand %p321, %p503
        %p505 = pneg %p504
        // Predicated region
        $region53: #{tpu_custom_call.1} parent=31 // pred_check
          _
        $region54: #{tpu_custom_call.1} parent=31 // pred_check_branch
          %507 = sbr.rel (%p504) target = $region56
        $region55: #{tpu_custom_call.1} parent=31 // pred_region
          %v508 = vld [vmem:[%s257] sm:$0xff]
          %v509 = vmul.f32 %v508, 0.17677669
          %v510 = vld [vmem:[%s266] sm:$0xff]
          %vm511 = vcmask 261120
          %v513 = vsel %vm511, %v509, 0
          %v516 = vsel %vm511, %v510, 0
          %518 = vmatprep.subr.mxu0 0.0
          %519 = vmatpush1.xpose.msra.mxu0 0.0
          %520 = vmatprep.subr.mxu0 0.0
          %521 = vmatpush1.xpose.msra.mxu0 0.0
          %522 = vmatprep.subr.mxu0 0.0
          %523 = vmatpush1.xpose.msra.mxu0 0.0
          %524 = vmatprep.subr.mxu0 0.0
          %525 = vmatpush1.xpose.msra.mxu0 0.0
          %526 = vmatprep.subr.mxu0 0.0
          %527 = vmatpush1.xpose.msra.mxu0 0.0
          %528 = vmatprep.subr.mxu0 0.0
          %529 = vmatpush1.xpose.msra.mxu0 0.0
          %530 = vmatprep.subr.mxu0 0.0
          %531 = vmatpush1.xpose.msra.mxu0 0.0
          %532 = vmatprep.subr.mxu0 0.0
          %533 = vmatpush1.xpose.msra.mxu0 0.0
          %534 = vmatprep.subr.mxu0 0.0
          %535 = vmatpush1.xpose.msra.mxu0 0.0
          %536 = vmatprep.subr.mxu0 0.0
          %537 = vmatpush1.xpose.msra.mxu0 0.0
          %538 = vmatprep.subr.mxu0 0.0
          %539 = vmatpush1.xpose.msra.mxu0 0.0
          %540 = vmatprep.subr.mxu0 0.0
          %541 = vmatpush1.xpose.msra.mxu0 0.0
          %542 = vmatprep.subr.mxu0 0.0
          %543 = vmatpush1.xpose.msra.mxu0 0.0
          %544 = vmatprep.subr.mxu0 0.0
          %545 = vmatpush1.xpose.msra.mxu0 0.0
          %546 = vmatprep.subr.mxu0 0.0
          %547 = vmatpush1.xpose.msra.mxu0 0.0
          %548 = vmatprep.subr.mxu0 0.0
          %549 = vmatpush1.xpose.msra.mxu0 %v516
          %550 = vmatprep.subr.mxu0 0.0
          %551 = vmatpush2.xpose.msra.mxu0 0.0
          %552 = vmatprep.subr.mxu0 0.0
          %553 = vmatpush2.xpose.msra.mxu0 0.0
          %554 = vmatprep.subr.mxu0 0.0
          %555 = vmatpush2.xpose.msra.mxu0 0.0
          %556 = vmatprep.subr.mxu0 0.0
          %557 = vmatpush2.xpose.msra.mxu0 0.0
          %558 = vmatprep.subr.mxu0 0.0
          %559 = vmatpush2.xpose.msra.mxu0 0.0
          %560 = vmatprep.subr.mxu0 0.0
          %561 = vmatpush2.xpose.msra.mxu0 0.0
          %562 = vmatprep.subr.mxu0 0.0
          %563 = vmatpush2.xpose.msra.mxu0 0.0
          %564 = vmatprep.subr.mxu0 0.0
          %565 = vmatpush2.xpose.msra.mxu0 0.0
          %566 = vmatprep.subr.mxu0 0.0
          %567 = vmatpush2.xpose.msra.mxu0 0.0
          %568 = vmatprep.subr.mxu0 0.0
          %569 = vmatpush2.xpose.msra.mxu0 0.0
          %570 = vmatprep.subr.mxu0 0.0
          %571 = vmatpush2.xpose.msra.mxu0 0.0
          %572 = vmatprep.subr.mxu0 0.0
          %573 = vmatpush2.xpose.msra.mxu0 0.0
          %574 = vmatprep.subr.mxu0 0.0
          %575 = vmatpush2.xpose.msra.mxu0 0.0
          %576 = vmatprep.subr.mxu0 0.0
          %577 = vmatpush2.xpose.msra.mxu0 0.0
          %578 = vmatprep.subr.mxu0 0.0
          %579 = vmatpush2.xpose.msra.mxu0 0.0
          %580 = vmatprep.subr.mxu0 0.0
          %581 = vmatpush2.xpose.msra.mxu0 0.0
          %582 = vmatprep.mubr.f32.mxu0 0.0
          %583 = vmatmul.mubr.f32.gmra.mxu0 %v513
          %v584 = vpop.f32.mrf.mxu0
          %v585 = vadd.f32 0.0, %v584
          %v586 = vpop.f32.mrf.mxu0
          %587 = vdwg.mxu0
          %v588 = vld [vmem:[#allocation2] sm:$0xff]
          %vm589 = vcmask 64512
          %v590 = vsel %vm589, %v585, -inf
          %591 = vmax.xlane.f32.xlu0 %v590
          %v592 = vpop.xlane.xlu0 %591
          %v593 = vmax.f32 %v588, %v592
          %v594 = vsub.f32 %v588, %v593
          %v595 = vmul.f32 %v594, 1.442695
          %v596 = vpow.pop %v595
          %598 = vset.pattern.permute.xlu0 0
          %599 = vperm.xlu0 %598, %v593
          %v600 = vpop.permute.xlu0 %599
          %v602 = vsub.f32 %v585, %v600
          %v603 = vmul.f32 %v602, 1.442695
          %v604 = vpow.pop %v603
          %v605 = vld [vmem:[#allocation3] sm:$0xff]
          %v606 = vmul.f32 %v596, %v605
          %v607 = vsel %vm589, %v604, 0.0
          %608 = vadd.xlane.f32.xlu0 %v607
          %v609 = vpop.xlane.xlu0 %608
          %v610 = vadd.f32 %v606, %v609
          %vm611 = vcmask 7168
          %612 = vst.msk [vmem:[#allocation3] sm:$0xff] %vm611, %v610
          %v613 = vld [vmem:[#allocation4] sm:$0xff]
          %615 = vset.pattern.permute.xlu0 0
          %616 = vperm.xlu0 %615, %v596
          %v617 = vpop.permute.xlu0 %616
          %v619 = vmul.f32 %v617, %v613
          %v620 = vpack.c.bf16 %v604, %v604
          %v621 = vld [vmem:[%s275] sm:$0xff]
          %v622 = vpack.c.bf16 %v621, %v621
          %v624 = vsel %vm589, %v620, 0
          %vm626 = vcmask 1043456
          %v628 = vsel %vm626, %v622, 0
          %630 = vmatprep.subr.bf16.mxu0 0
          %631 = vmatpush1.bf16.msra.mxu0 0
          %632 = vmatprep.subr.bf16.mxu0 0
          %633 = vmatpush1.bf16.msra.mxu0 0
          %634 = vmatprep.subr.bf16.mxu0 0
          %635 = vmatpush1.bf16.msra.mxu0 0
          %636 = vmatprep.subr.bf16.mxu0 0
          %637 = vmatpush1.bf16.msra.mxu0 0
          %638 = vmatprep.subr.bf16.mxu0 0
          %639 = vmatpush1.bf16.msra.mxu0 0
          %640 = vmatprep.subr.bf16.mxu0 0
          %641 = vmatpush1.bf16.msra.mxu0 0
          %642 = vmatprep.subr.bf16.mxu0 0
          %643 = vmatpush1.bf16.msra.mxu0 0
          %644 = vmatprep.subr.bf16.mxu0 0
          %645 = vmatpush1.bf16.msra.mxu0 %v628
          %646 = vmatprep.subr.bf16.mxu0 0
          %647 = vmatpush2.bf16.msra.mxu0 0
          %648 = vmatprep.subr.bf16.mxu0 0
          %649 = vmatpush2.bf16.msra.mxu0 0
          %650 = vmatprep.subr.bf16.mxu0 0
          %651 = vmatpush2.bf16.msra.mxu0 0
          %652 = vmatprep.subr.bf16.mxu0 0
          %653 = vmatpush2.bf16.msra.mxu0 0
          %654 = vmatprep.subr.bf16.mxu0 0
          %655 = vmatpush2.bf16.msra.mxu0 0
          %656 = vmatprep.subr.bf16.mxu0 0
          %657 = vmatpush2.bf16.msra.mxu0 0
          %658 = vmatprep.subr.bf16.mxu0 0
          %659 = vmatpush2.bf16.msra.mxu0 0
          %660 = vmatprep.subr.bf16.mxu0 0
          %661 = vmatpush2.bf16.msra.mxu0 0
          %662 = vmatprep.mubr.bf16.mxu0 0
          %663 = vmatmul.mubr.bf16.gmra.mxu0 %v624
          %v664 = vpop.f32.mrf.mxu0
          %v665 = vadd.f32 0.0, %v664
          %v666 = vpop.f32.mrf.mxu0
          %v667 = vpop.f32.mrf.mxu0
          %v668 = vpop.f32.mrf.mxu0
          %669 = vdwg.mxu0
          %v670 = vadd.f32 %v619, %v665
          %671 = vst.msk [vmem:[#allocation4] sm:$0xff] %vm511, %v670
          %672 = vst.msk [vmem:[#allocation2] sm:$0xff] %vm611, %v593
        $region56: #{tpu_custom_call.1} parent=31 // pred_fallthru
          _
        // Predicated region
        $region57: #{tpu_custom_call.1} parent=31 // pred_check
          %p673 = pneg %p311
        $region58: #{tpu_custom_call.1} parent=31 // pred_check_branch
          %675 = sbr.rel (%p673) target = $region60
        $region59: #{tpu_custom_call.1} parent=31 // pred_region
          %v676 = vld [vmem:[#allocation4] sm:$0xff]
          %v677 = vld [vmem:[#allocation3] sm:$0xff]
          %v678 = vrcp.pop %v677
          %680 = vset.pattern.permute.xlu0 0
          %681 = vperm.xlu0 %680, %v678
          %v682 = vpop.permute.xlu0 %681
          %v684 = vmul.f32 %v676, %v682
          %vm685 = vcmask 261120
          %686 = vst.msk [vmem:[%s307] sm:$0xff] %vm685, %v684
        $region60: #{tpu_custom_call.1} parent=31 // pred_fallthru
          _
        %s687 = sand.u32 %s151, 1
        %s688 = scalar_lea.sflag [#allocation7], %s687
        %s689 = sand.u32 %s151, 1
        %s690 = smul.addr %s689, 8
        %s691 = scalar_lea.vmem [#allocation11], %s690
        // Predicated region
        $region61: #{tpu_custom_call.1} parent=31 // pred_check
          %p692 = pneg %p161
        $region62: #{tpu_custom_call.1} parent=31 // pred_check_branch
          %694 = sbr.rel (%p692) target = $region64
        $region63: #{tpu_custom_call.1} parent=31 // pred_region
          %s696 = ssub.s32 128, 128
          %697 = vsyncadd %s688, %s696
          %s698 = sadd.s32 %s31, %s30
          %s699 = smul.addr %s29, 4
          %s700 = sadd.s32 %s698, %s699
          %s701 = smul.addr %s700, 128
          %s702 = scalar_lea.hbm %s3, %s701
          %s704 = sshll.u32 %s691, 4
          %s705 = int_to_ptr.vmem [resolvable:$true] %s704
          %707 = dma.vmem_to_hbm [thread:$0]  %s705, 128, %s702, %s688
        $region64: #{tpu_custom_call.1} parent=31 // pred_fallthru
          _
      $region32: #{tpu_custom_call.1} parent=5 // pred_fallthru
        _
      %p708 = scmp.le.s32.totalorder 2, %s18
      // Predicated region
      $region65: #{tpu_custom_call.1} parent=5 // pred_check
        %p709 = pneg %p708
      $region66: #{tpu_custom_call.1} parent=5 // pred_check_branch
        %711 = sbr.rel (%p709) target = $region68
      $region67: #{tpu_custom_call.1} parent=5 // pred_region
        %s712 = ssub.s32 %s18, 2
        // Predicated region
        $region69: #{tpu_custom_call.1} parent=67 // pred_check
          %p713 = pneg %p167
        $region70: #{tpu_custom_call.1} parent=67 // pred_check_branch
          %715 = sbr.rel (%p713) target = $region72
        $region71: #{tpu_custom_call.1} parent=67 // pred_region
          %s716 = sand.u32 %s152, 1
          %s717 = scalar_lea.sflag [#allocation7], %s716
          %s718 = sand.u32 %s152, 1
          %s719 = smul.addr %s718, 8
          %s720 = scalar_lea.vmem [#allocation11], %s719
          %721 = dma.done %s717, 128
        $region72: #{tpu_custom_call.1} parent=67 // pred_fallthru
          _
      $region68: #{tpu_custom_call.1} parent=5 // pred_fallthru
        _
    $region6: #{tpu_custom_call.1} parent=1 // loop_footer
      %s22 = sadd.s32 1, %s18
    $region7: #{tpu_custom_call.1} parent=1 // loop_footer_branch
      %17 = sbr.rel target = $region3
    $region8: #{tpu_custom_call.1} parent=1 // loop_exit
      _
    %722 = vsyncpa [#allocation6], 1
    %s723 = scalar_lea.sflag [#allocation6], 1
    %724 = vsyncpa %s723, 1
    %725 = vsyncpa [#allocation9], 1
    %s726 = scalar_lea.sflag [#allocation9], 1
    %727 = vsyncpa %s726, 1
    %728 = vsyncpa [#allocation7], 1
    %s729 = scalar_lea.sflag [#allocation7], 1
    %730 = vsyncpa %s729, 1

</llo_original>
